<compile_context>
chip_gen: v7x
topology: tpu7x:2x2x1
jax: 0.10.0
libtpu: 0.0.40
codegen_flags: <defaults>
</compile_context>

<pallas_src>
import jax
import jax.numpy as jnp
from jax.experimental import pallas as pl
from jax.experimental.pallas import tpu as pltpu


def _softplus(z):
    # numerically stable softplus == BCEWithLogits core term
    return jnp.maximum(z, 0.0) + jnp.log1p(jnp.exp(-jnp.abs(z)))


# ----------------------------- kernels ------------------------------------ #

def gcn_layer1_kernel(adj_ref, x_ref, w1_ref, a1_ref, w2_ref, g_ref, acc_ref):
    """g_cat = PReLU_a1((adj @ x_cat) @ W1_blk) @ W2_blk, tiled over adj rows/cols.

    The adj-column axis (grid axis 1) is the reduction axis: acc_ref holds the
    running f32 (tm, 2*F_in) partial of adj @ x_cat; the cheap feature matmuls
    and the PReLU run once per row tile in the finalize step.
    """
    k = pl.program_id(1)

    @pl.when(k == 0)
    def _init():
        acc_ref[...] = jnp.zeros_like(acc_ref)

    acc_ref[...] += jnp.dot(adj_ref[...], x_ref[...],
                            preferred_element_type=jnp.float32)

    @pl.when(k == pl.num_programs(1) - 1)
    def _finalize():
        h = jnp.dot(acc_ref[...], w1_ref[...],
                    preferred_element_type=jnp.float32)        # (tm, 2*hidden)
        h = jnp.where(h >= 0.0, h, a1_ref[...] * h)            # PReLU 1
        g = jnp.dot(h, w2_ref[...],
                    preferred_element_type=jnp.float32)        # (tm, 2*out)
        g_ref[...] = g.astype(g_ref.dtype)                     # bf16 for layer 2


def gcn_layer2_kernel(adj_ref, g_ref, a2_ref, out_ref, acc_ref):
    """h2_cat = PReLU_a2(adj @ g_cat), tiled over adj rows/cols (reduction on k)."""
    k = pl.program_id(1)

    @pl.when(k == 0)
    def _init():
        acc_ref[...] = jnp.zeros_like(acc_ref)

    acc_ref[...] += jnp.dot(adj_ref[...], g_ref[...],
                            preferred_element_type=jnp.float32)

    @pl.when(k == pl.num_programs(1) - 1)
    def _finalize():
        h2 = acc_ref[...]
        out_ref[...] = jnp.where(h2 >= 0.0, h2, a2_ref[...] * h2)   # PReLU 2


def disc_loss_kernel(pos_ref, neg_ref, wT_ref, loss_ref):
    """summary/discriminator/BCEWithLogits, re-associated: v = W @ s computed once."""
    pos = pos_ref[...]                                             # (N, D) f32
    neg = neg_ref[...]                                             # (N, D) f32
    # summary = sigmoid(mean over nodes of the positive embeddings)
    s = jax.nn.sigmoid(jnp.mean(pos, axis=0, keepdims=True))       # (1, D)
    # v = W @ s ; as a row vector vT = s @ W^T (W^T is passed in pre-transposed)
    vT = jnp.dot(s, wT_ref[...], preferred_element_type=jnp.float32)  # (1, D)
    pos_d = jnp.sum(pos * vT, axis=-1, keepdims=True)              # (N, 1) logits
    neg_d = jnp.sum(neg * vT, axis=-1, keepdims=True)              # (N, 1) logits
    # BCEWithLogits(pos_d, 1) = softplus(-pos_d);  BCEWithLogits(neg_d, 0) = softplus(neg_d)
    l1 = jnp.mean(_softplus(-pos_d))
    l2 = jnp.mean(_softplus(neg_d))
    loss_ref[0, 0] = l1 + l2


# ----------------------------- wrappers ------------------------------------ #

_VMEM = pl.BlockSpec(memory_space=pltpu.MemorySpace.VMEM)
_SMEM = pl.BlockSpec(memory_space=pltpu.MemorySpace.SMEM)

_COMPILER_PARAMS = pltpu.CompilerParams(
    dimension_semantics=("parallel", "arbitrary"),   # row tiles // , adj-col reduction
    vmem_limit_bytes=32 * 1024 * 1024,               # explicit: safe on v5e/v6e/v7x
)


def _pick_tile(n: int) -> int:
    """Largest tile from a VMEM-safe ladder that divides n (fallback: whole axis)."""
    for t in (512, 256, 128):
        if n % t == 0:
            return t
    return n


def _block_diag2(w):
    r, c = w.shape
    z = jnp.zeros((r, c), w.dtype)
    return jnp.concatenate(
        [jnp.concatenate([w, z], axis=1), jnp.concatenate([z, w], axis=1)], axis=0)


def gcn_encoder_fused(adj, x_cat, w1_blk, a1_cat, w2_blk, a2_cat):
    """Fused positive+negative 2-layer GCN encoder -> h2_cat = [h2_pos | h2_neg]."""
    n = adj.shape[0]
    two_fin = x_cat.shape[1]
    two_h = w1_blk.shape[1]
    two_out = w2_blk.shape[1]

    tm = _pick_tile(n)
    tk = tm
    grid = (n // tm, n // tk)

    adj_bf = adj.astype(jnp.bfloat16)
    x_bf = x_cat.astype(jnp.bfloat16)

    # Layer 1 (+ re-associated layer-2 feature matmul): g_cat = prelu1((A@Xc)@W1b)@W2b
    g_cat = pl.pallas_call(
        gcn_layer1_kernel,
        out_shape=jax.ShapeDtypeStruct((n, two_out), jnp.bfloat16),
        grid_spec=pltpu.PrefetchScalarGridSpec(
            num_scalar_prefetch=0,
            grid=grid,
            in_specs=[
                pl.BlockSpec((tm, tk), lambda i, k: (i, k)),        # adj tile
                pl.BlockSpec((tk, two_fin), lambda i, k: (k, 0)),   # x_cat rows = adj cols
                pl.BlockSpec((two_fin, two_h), lambda i, k: (0, 0)),
                pl.BlockSpec((1, two_h), lambda i, k: (0, 0)),
                pl.BlockSpec((two_h, two_out), lambda i, k: (0, 0)),
            ],
            out_specs=pl.BlockSpec((tm, two_out), lambda i, k: (i, 0)),
            scratch_shapes=[pltpu.VMEM((tm, two_fin), jnp.float32)],
        ),
        compiler_params=_COMPILER_PARAMS,
    )(adj_bf, x_bf, w1_blk, a1_cat, w2_blk)

    # Layer 2: h2_cat = prelu2(adj @ g_cat)
    h2_cat = pl.pallas_call(
        gcn_layer2_kernel,
        out_shape=jax.ShapeDtypeStruct((n, two_out), jnp.float32),
        grid_spec=pltpu.PrefetchScalarGridSpec(
            num_scalar_prefetch=0,
            grid=grid,
            in_specs=[
                pl.BlockSpec((tm, tk), lambda i, k: (i, k)),
                pl.BlockSpec((tk, two_out), lambda i, k: (k, 0)),
                pl.BlockSpec((1, two_out), lambda i, k: (0, 0)),
            ],
            out_specs=pl.BlockSpec((tm, two_out), lambda i, k: (i, 0)),
            scratch_shapes=[pltpu.VMEM((tm, two_out), jnp.float32)],
        ),
        compiler_params=_COMPILER_PARAMS,
    )(adj_bf, g_cat, a2_cat)

    return h2_cat


def disc_and_loss(positive, negative, wd_T):
    return pl.pallas_call(
        disc_loss_kernel,
        out_shape=jax.ShapeDtypeStruct((1, 1), jnp.float32),
        in_specs=[_VMEM, _VMEM, _VMEM],
        out_specs=_SMEM,
    )(positive, negative, wd_T)


def gclmtp_forward(adj, x, x_neg, w1, a1, w2, a2, wd):
    """Full GCLMTP forward: returns (L, positive).  x_neg is the row-permuted x."""
    out_dim = w2.shape[1]
    # Fuse both encoder passes along the channel axis (same adj, same weights).
    x_cat = jnp.concatenate([x, x_neg], axis=1)          # (N, 2*F_in)
    w1_blk = _block_diag2(w1)                            # (2*F_in, 2*hidden)
    w2_blk = _block_diag2(w2)                            # (2*hidden, 2*out)
    a1_cat = jnp.concatenate([a1, a1], axis=1)           # (1, 2*hidden)
    a2_cat = jnp.concatenate([a2, a2], axis=1)           # (1, 2*out)

    h2_cat = gcn_encoder_fused(adj, x_cat, w1_blk, a1_cat, w2_blk, a2_cat)
    positive = h2_cat[:, :out_dim]
    negative = h2_cat[:, out_dim:]

    loss = disc_and_loss(positive, negative, wd.T)[0, 0]
    return loss, positive


# ----------------------------- reference (plain JAX, f32) ------------------ #

def _reference_forward(adj, x, x_neg, w1, a1, w2, a2, wd):
    def enc(xx):
        h1 = jnp.dot(jnp.dot(adj, xx), w1)
        h1 = jnp.where(h1 >= 0.0, h1, a1 * h1)
        h2 = jnp.dot(jnp.dot(adj, h1), w2)
        return jnp.where(h2 >= 0.0, h2, a2 * h2)

    pos = enc(x)
    neg = enc(x_neg)
    s = jax.nn.sigmoid(jnp.mean(pos, axis=0))
    v = wd @ s
    pd = pos @ v
    nd = neg @ v
    loss = jnp.mean(jax.nn.softplus(-pd)) + jnp.mean(jax.nn.softplus(nd))
    return loss, pos


# ----------------------------- driver -------------------------------------- #

if __name__ == "__main__":
    key = jax.random.PRNGKey(0)
    keys = jax.random.split(key, 6)

    # Small but multi-tile shapes: N=384 -> 128-wide tiles, grid (3, 3).
    N, input_dim, hidden_dim, output_dim = 384, 16, 32, 8

    # node features
    x = jax.random.normal(keys[0], (N, input_dim), dtype=jnp.float32)

    # deterministic dense "edge_index": symmetric, self-loops, row-normalized
    a_raw = (jax.random.uniform(keys[1], (N, N)) < 0.5).astype(jnp.float32)
    adj = a_raw + a_raw.T + jnp.eye(N, dtype=jnp.float32)
    adj = adj / jnp.sum(adj, axis=1, keepdims=True)

    # xavier_uniform_(gain=1.414), matching torch's init semantics
    def xavier(k, shape, gain=1.414):
        fan_in, fan_out = shape
        bound = gain * (6.0 / (fan_in + fan_out)) ** 0.5
        return jax.random.uniform(k, shape, jnp.float32, -bound, bound)

    w1 = xavier(keys[2], (input_dim, hidden_dim))       # GCNConv 1
    w2 = xavier(keys[3], (hidden_dim, output_dim))      # GCNConv 2
    wd = xavier(keys[4], (output_dim, output_dim))      # Discriminator
    a1 = jnp.full((1, hidden_dim), 0.25, jnp.float32)   # PReLU 1 (torch default)
    a2 = jnp.full((1, output_dim), 0.25, jnp.float32)   # PReLU 2

    # corruption: torch.randperm replaced by a deterministic jax permutation (glue)
    perm = jax.random.permutation(keys[5], N)
    x_neg = x[perm]

    loss, positive = gclmtp_forward(adj, x, x_neg, w1, a1, w2, a2, wd)
    jax.block_until_ready((loss, positive))

    # correctness vs plain-JAX f32 reference (loose tol: bf16 MXU operands)
    loss_ref, pos_ref = _reference_forward(adj, x, x_neg, w1, a1, w2, a2, wd)
    assert positive.shape == (N, output_dim)
    assert loss.shape == ()
    assert bool(jnp.allclose(positive, pos_ref, rtol=5e-2, atol=5e-2))
    assert bool(jnp.allclose(loss, loss_ref, rtol=5e-2, atol=5e-2))

    print("KERNEL_OK")
</pallas_src>

<mosaic_0001>
module attributes {stable_mosaic.version = 11 : i64} {
  func.func @gcn_layer1_kernel(%arg0: i32, %arg1: i32, %arg2: memref<128x128xbf16, #tpu.memory_space<vmem>>, %arg3: memref<128x32xbf16, #tpu.memory_space<vmem>>, %arg4: memref<32x64xf32, #tpu.memory_space<vmem>>, %arg5: memref<1x64xf32, #tpu.memory_space<vmem>>, %arg6: memref<64x16xf32, #tpu.memory_space<vmem>>, %arg7: memref<128x16xbf16, #tpu.memory_space<vmem>>, %arg8: memref<128x32xf32, #tpu.memory_space<vmem>>) attributes {dimension_semantics = [#tpu.dimension_semantics<parallel>, #tpu.dimension_semantics<arbitrary>], iteration_bounds = array<i64: 3, 3>, scalar_prefetch = 0 : i64, scratch_operands = 1 : i64, tpu.core_type = #tpu.core_type<tc>, window_params = [{transform_indices = @transform_0, window_bounds = array<i64: 128, 128>}, {transform_indices = @transform_1, window_bounds = array<i64: 128, 32>}, {pipeline_mode = #tpu.pipeline_mode<synchronous>, transform_indices = @transform_2, window_bounds = array<i64: 32, 64>}, {pipeline_mode = #tpu.pipeline_mode<synchronous>, transform_indices = @transform_3, window_bounds = array<i64: 1, 64>}, {pipeline_mode = #tpu.pipeline_mode<synchronous>, transform_indices = @transform_4, window_bounds = array<i64: 64, 16>}, {transform_indices = @transform_5, window_bounds = array<i64: 128, 16>}]} {
    %c0_i32 = arith.constant 0 : i32
    %0 = arith.cmpi eq, %arg1, %c0_i32 : i32
    %1 = arith.extui %0 : i1 to i32
    %c0_i32_0 = arith.constant 0 : i32
    %2 = arith.cmpi ne, %1, %c0_i32_0 : i32
    scf.if %2 {
      %cst_9 = arith.constant 0.000000e+00 : f32
      %12 = vector.broadcast %cst_9 : f32 to vector<128x32xf32>
      %c0_10 = arith.constant 0 : index
      %c0_11 = arith.constant 0 : index
      %13 = vector.load %arg8[%c0_10, %c0_11] : memref<128x32xf32, #tpu.memory_space<vmem>>, vector<128x32xf32>
      tpu.vector_store %arg8[%c0_10, %c0_11], %12 {strides = array<i32>} : memref<128x32xf32, #tpu.memory_space<vmem>>, vector<128x32xf32>,
    } else {
    }
    %c0 = arith.constant 0 : index
    %c0_1 = arith.constant 0 : index
    %3 = vector.load %arg8[%c0, %c0_1] : memref<128x32xf32, #tpu.memory_space<vmem>>, vector<128x32xf32>
    %c0_2 = arith.constant 0 : index
    %c0_3 = arith.constant 0 : index
    %4 = vector.load %arg2[%c0_2, %c0_3] : memref<128x128xbf16, #tpu.memory_space<vmem>>, vector<128x128xbf16>
    %c0_4 = arith.constant 0 : index
    %c0_5 = arith.constant 0 : index
    %5 = vector.load %arg3[%c0_4, %c0_5] : memref<128x32xbf16, #tpu.memory_space<vmem>>, vector<128x32xbf16>
    %cst = arith.constant dense<0.000000e+00> : vector<128x32xf32>
    %6 = tpu.matmul %4, %5, %cst {dimension_numbers = #tpu.dot_dimension_numbers<[1], [0], [0], [1], [0, 0, 1, 1], [], []>} : vector<128x128xbf16>, vector<128x32xbf16>, vector<128x32xf32> -> vector<128x32xf32>
    %7 = arith.addf %3, %6 : vector<128x32xf32>
    %c0_6 = arith.constant 0 : index
    %c0_7 = arith.constant 0 : index
    %8 = vector.load %arg8[%c0_6, %c0_7] : memref<128x32xf32, #tpu.memory_space<vmem>>, vector<128x32xf32>
    tpu.vector_store %arg8[%c0_6, %c0_7], %7 {strides = array<i32>} : memref<128x32xf32, #tpu.memory_space<vmem>>, vector<128x32xf32>,
    %c2_i32 = arith.constant 2 : i32
    %9 = arith.cmpi eq, %arg1, %c2_i32 : i32
    %10 = arith.extui %9 : i1 to i32
    %c0_i32_8 = arith.constant 0 : i32
    %11 = arith.cmpi ne, %10, %c0_i32_8 : i32
    scf.if %11 {
      %c0_9 = arith.constant 0 : index
      %c0_10 = arith.constant 0 : index
      %12 = vector.load %arg8[%c0_9, %c0_10] : memref<128x32xf32, #tpu.memory_space<vmem>>, vector<128x32xf32>
      %c0_11 = arith.constant 0 : index
      %c0_12 = arith.constant 0 : index
      %13 = vector.load %arg4[%c0_11, %c0_12] : memref<32x64xf32, #tpu.memory_space<vmem>>, vector<32x64xf32>
      %cst_13 = arith.constant dense<0.000000e+00> : vector<128x64xf32>
      %14 = tpu.matmul %12, %13, %cst_13 {dimension_numbers = #tpu.dot_dimension_numbers<[1], [0], [0], [1], [0, 0, 1, 1], [], []>} : vector<128x32xf32>, vector<32x64xf32>, vector<128x64xf32> -> vector<128x64xf32>
      %cst_14 = arith.constant 0.000000e+00 : f32
      %15 = vector.broadcast %cst_14 : f32 to vector<128x64xf32>
      %16 = arith.cmpf oge, %14, %15 : vector<128x64xf32>
      %c0_15 = arith.constant 0 : index
      %c0_16 = arith.constant 0 : index
      %17 = vector.load %arg5[%c0_15, %c0_16] : memref<1x64xf32, #tpu.memory_space<vmem>>, vector<1x64xf32>
      %18 = vector.broadcast %17 : vector<1x64xf32> to vector<128x64xf32>
      %19 = arith.mulf %18, %14 : vector<128x64xf32>
      %20 = arith.select %16, %14, %19 : vector<128x64xi1>, vector<128x64xf32>
      %c0_17 = arith.constant 0 : index
      %c0_18 = arith.constant 0 : index
      %21 = vector.load %arg6[%c0_17, %c0_18] : memref<64x16xf32, #tpu.memory_space<vmem>>, vector<64x16xf32>
      %cst_19 = arith.constant dense<0.000000e+00> : vector<128x16xf32>
      %22 = tpu.matmul %20, %21, %cst_19 {dimension_numbers = #tpu.dot_dimension_numbers<[1], [0], [0], [1], [0, 0, 1, 1], [], []>} : vector<128x64xf32>, vector<64x16xf32>, vector<128x16xf32> -> vector<128x16xf32>
      %23 = arith.truncf %22 : vector<128x16xf32> to vector<128x16xbf16>
      %c0_20 = arith.constant 0 : index
      %c0_21 = arith.constant 0 : index
      %24 = vector.load %arg7[%c0_20, %c0_21] : memref<128x16xbf16, #tpu.memory_space<vmem>>, vector<128x16xbf16>
      tpu.vector_store %arg7[%c0_20, %c0_21], %23 {strides = array<i32>} : memref<128x16xbf16, #tpu.memory_space<vmem>>, vector<128x16xbf16>,
    } else {
    }
    return
  }
  func.func @transform_0(%arg0: i32, %arg1: i32) -> (i32, i32) {
    %c0_i32 = arith.constant 0 : i32
    return %arg0, %arg1 : i32, i32
  }
  func.func @transform_1(%arg0: i32, %arg1: i32) -> (i32, i32) {
    %c0_i32 = arith.constant 0 : i32
    %c0_i32_0 = arith.constant 0 : i32
    return %arg1, %c0_i32 : i32, i32
  }
  func.func @transform_2(%arg0: i32, %arg1: i32) -> (i32, i32) {
    %c0_i32 = arith.constant 0 : i32
    %c0_i32_0 = arith.constant 0 : i32
    %c0_i32_1 = arith.constant 0 : i32
    return %c0_i32, %c0_i32_0 : i32, i32
  }
  func.func @transform_3(%arg0: i32, %arg1: i32) -> (i32, i32) {
    %c0_i32 = arith.constant 0 : i32
    %c0_i32_0 = arith.constant 0 : i32
    %c0_i32_1 = arith.constant 0 : i32
    return %c0_i32, %c0_i32_0 : i32, i32
  }
  func.func @transform_4(%arg0: i32, %arg1: i32) -> (i32, i32) {
    %c0_i32 = arith.constant 0 : i32
    %c0_i32_0 = arith.constant 0 : i32
    %c0_i32_1 = arith.constant 0 : i32
    return %c0_i32, %c0_i32_0 : i32, i32
  }
  func.func @transform_5(%arg0: i32, %arg1: i32) -> (i32, i32) {
    %c0_i32 = arith.constant 0 : i32
    %c0_i32_0 = arith.constant 0 : i32
    return %arg0, %c0_i32 : i32, i32
  }
}

</mosaic_0001>

<llo_original>
// kernel: tpu_custom_call.1
$region0: #{tpu_custom_call.1}
  #allocation0 [shape = 'u32[]', space=smem, size = 0x4, offset = 0x4, fixed_abs, tag = 'smem constant byte address 0x4 - core index']
  #allocation1 [shape = 'u32[144,128]{1,0:T(1,128)}', space=vmem, size = 0x12000, scoped, tag = 'internal scratch']
  #allocation2 [shape = 'f32[128,32]{1,0:T(8,128)}', space=vmem, size = 0x10000, scoped, tag = 'scratch operand']
  %s0 = inlined_call_operand.hbm [shape: bf16[384,384], index: 0, kind: input, shape index: {}]
  %s1 = inlined_call_operand.vmem [shape: bf16[384,32], index: 1, kind: input, shape index: {}]
  %s2 = inlined_call_operand.vmem [shape: f32[32,64], index: 2, kind: input, shape index: {}]
  %s3 = inlined_call_operand.vmem [shape: f32[1,64], index: 3, kind: input, shape index: {}]
  %s4 = inlined_call_operand.vmem [shape: f32[64,16], index: 4, kind: input, shape index: {}]
  %s5 = inlined_call_operand.vmem [shape: bf16[384,16], index: 5, kind: output, shape index: {}]
  %s6 = sld [smem:[#allocation0]]
  $region65: #{tpu_custom_call.1} parent=0
    _
  %s8 = ssub.s32 1, %s6
  %s9 = scalar_select 0, %s8, %s6
  $region1: #{tpu_custom_call.1} parent=0
    #allocation3 [shape = 'u8[65536]{0}', space=vmem, size = 0x10000, scoped, tag = 'input window, operand 0']
    #allocation4 [shape = 's32[2]{0}', space=sflag, size = 0x8, scoped, tag = 'scoped memory for tpu_custom_call.1']
    %10 = vsyncpa [#allocation4], 0
    %s11 = scalar_lea.sflag [#allocation4], 1
    %12 = vsyncpa %s11, 0
    loop: start=0, step=1, limit=11
    $region2: #{tpu_custom_call.1} parent=1 // loop_pre_header
      _
    $region3: #{tpu_custom_call.1} parent=1 // loop_header
      %s14 = sphi 0, %s18
      %p15 = scmp.ge.s32.totalorder %s14, 11
      %s21 = sphi 0, %s33
      %s22 = sphi 0, %s29
      %s23 = sphi 0, %s21
      %s24 = sphi 0, %s22
      %s25 = sphi 0, %s23
      %s26 = sphi 0, %s24
      %s38 = sphi 0, %s40
      %s41 = sphi 0, %s38
      %s42 = sphi 0, %s41
      %s58 = sphi 0, %s42
      %s64 = sphi 0, %s66
      %s67 = sphi 0, %s64
      %s68 = sphi 0, %s67
      %s84 = sphi 0, %s68
      %s88 = sphi 0, %s88
      %s90 = sphi 0, %s88
      %s91 = sphi 0, %s90
      %s105 = sphi 0, %s91
      %s109 = sphi 0, %s109
      %s111 = sphi 0, %s109
      %s112 = sphi 0, %s111
      %s126 = sphi 0, %s112
      %s130 = sphi 0, %s130
      %s132 = sphi 0, %s130
      %s133 = sphi 0, %s132
      %s147 = sphi 0, %s133
      %s153 = sphi 0, %s155
      %s156 = sphi 0, %s153
      %s157 = sphi 0, %s156
      %s173 = sphi 0, %s157
    $region4: #{tpu_custom_call.1} parent=1 // loop_header_branch
      %17 = sbr.rel (%p15) target = $region8
    $region5: #{tpu_custom_call.1} parent=1 // loop_body
      %s19 = ssub.s32 %s14, 1
      %s20 = ssub.s32 %s14, 2
      %s27 = sadd.s32 1, %s22
      %p28 = scmp.ge.s32.totalorder %s27, 3
      %s29 = scalar_select %p28, 0, %s27
      %s30 = sadd.s32 1, %s21
      %s31 = scalar_select %p28, %s30, %s21
      %p32 = scmp.ge.s32.totalorder %s31, 3
      %s33 = scalar_select %p32, 0, %s31
      %s34 = ssub.s32 %s21, %s33
      %s35 = ssub.s32 %s22, %s29
      %s36 = sor.u32 %s34, %s35
      %p37 = scmp.eq.s32.totalorder %s36, 0
      %s39 = sadd.s32 %s38, 1
      %s40 = scalar_select %p37, %s38, %s39
      %p43 = pneg %p37
      %p44 = scmp.eq.s32.totalorder %s14, 8
      %p45 = por %p43, %p44
      %p46 = scmp.ne.s32.totalorder %s38, %s41
      %p47 = scmp.eq.s32.totalorder %s14, 0
      %p48 = por %p46, %p47
      %p49 = scmp.ne.s32.totalorder %s38, %s41
      %p50 = scmp.eq.s32.totalorder %s19, 8
      %p51 = por %p49, %p50
      %p52 = scmp.ne.s32.totalorder %s41, %s42
      %p53 = scmp.eq.s32.totalorder %s19, 0
      %p54 = por %p52, %p53
      %p55 = scmp.ne.s32.totalorder %s41, %s42
      %p56 = scmp.eq.s32.totalorder %s20, 8
      %p57 = por %p55, %p56
      %p59 = scmp.ne.s32.totalorder %s42, %s58
      %p60 = scmp.eq.s32.totalorder %s20, 0
      %p61 = por %p59, %p60
      %s62 = ssub.s32 %s22, %s29
      %p63 = scmp.eq.s32.totalorder %s62, 0
      %s65 = sadd.s32 %s64, 1
      %s66 = scalar_select %p63, %s64, %s65
      %p69 = pneg %p63
      %p70 = scmp.eq.s32.totalorder %s14, 8
      %p71 = por %p69, %p70
      %p72 = scmp.ne.s32.totalorder %s64, %s67
      %p73 = scmp.eq.s32.totalorder %s14, 0
      %p74 = por %p72, %p73
      %p75 = scmp.ne.s32.totalorder %s64, %s67
      %p76 = scmp.eq.s32.totalorder %s19, 8
      %p77 = por %p75, %p76
      %p78 = scmp.ne.s32.totalorder %s67, %s68
      %p79 = scmp.eq.s32.totalorder %s19, 0
      %p80 = por %p78, %p79
      %p81 = scmp.ne.s32.totalorder %s67, %s68
      %p82 = scmp.eq.s32.totalorder %s20, 8
      %p83 = por %p81, %p82
      %p85 = scmp.ne.s32.totalorder %s68, %s84
      %p86 = scmp.eq.s32.totalorder %s20, 0
      %p87 = por %p85, %p86
      %s89 = sadd.s32 %s88, 1
      %p92 = scmp.eq.s32.totalorder %s14, 8
      %p93 = scmp.ne.s32.totalorder %s88, %s90
      %p94 = scmp.eq.s32.totalorder %s14, 0
      %p95 = por %p93, %p94
      %p96 = scmp.ne.s32.totalorder %s88, %s90
      %p97 = scmp.eq.s32.totalorder %s19, 8
      %p98 = por %p96, %p97
      %p99 = scmp.ne.s32.totalorder %s90, %s91
      %p100 = scmp.eq.s32.totalorder %s19, 0
      %p101 = por %p99, %p100
      %p102 = scmp.ne.s32.totalorder %s90, %s91
      %p103 = scmp.eq.s32.totalorder %s20, 8
      %p104 = por %p102, %p103
      %p106 = scmp.ne.s32.totalorder %s91, %s105
      %p107 = scmp.eq.s32.totalorder %s20, 0
      %p108 = por %p106, %p107
      %s110 = sadd.s32 %s109, 1
      %p113 = scmp.eq.s32.totalorder %s14, 8
      %p114 = scmp.ne.s32.totalorder %s109, %s111
      %p115 = scmp.eq.s32.totalorder %s14, 0
      %p116 = por %p114, %p115
      %p117 = scmp.ne.s32.totalorder %s109, %s111
      %p118 = scmp.eq.s32.totalorder %s19, 8
      %p119 = por %p117, %p118
      %p120 = scmp.ne.s32.totalorder %s111, %s112
      %p121 = scmp.eq.s32.totalorder %s19, 0
      %p122 = por %p120, %p121
      %p123 = scmp.ne.s32.totalorder %s111, %s112
      %p124 = scmp.eq.s32.totalorder %s20, 8
      %p125 = por %p123, %p124
      %p127 = scmp.ne.s32.totalorder %s112, %s126
      %p128 = scmp.eq.s32.totalorder %s20, 0
      %p129 = por %p127, %p128
      %s131 = sadd.s32 %s130, 1
      %p134 = scmp.eq.s32.totalorder %s14, 8
      %p135 = scmp.ne.s32.totalorder %s130, %s132
      %p136 = scmp.eq.s32.totalorder %s14, 0
      %p137 = por %p135, %p136
      %p138 = scmp.ne.s32.totalorder %s130, %s132
      %p139 = scmp.eq.s32.totalorder %s19, 8
      %p140 = por %p138, %p139
      %p141 = scmp.ne.s32.totalorder %s132, %s133
      %p142 = scmp.eq.s32.totalorder %s19, 0
      %p143 = por %p141, %p142
      %p144 = scmp.ne.s32.totalorder %s132, %s133
      %p145 = scmp.eq.s32.totalorder %s20, 8
      %p146 = por %p144, %p145
      %p148 = scmp.ne.s32.totalorder %s133, %s147
      %p149 = scmp.eq.s32.totalorder %s20, 0
      %p150 = por %p148, %p149
      %s151 = ssub.s32 %s21, %s33
      %p152 = scmp.eq.s32.totalorder %s151, 0
      %s154 = sadd.s32 %s153, 1
      %s155 = scalar_select %p152, %s153, %s154
      %p158 = pneg %p152
      %p159 = scmp.eq.s32.totalorder %s14, 8
      %p160 = por %p158, %p159
      %p161 = scmp.ne.s32.totalorder %s153, %s156
      %p162 = scmp.eq.s32.totalorder %s14, 0
      %p163 = por %p161, %p162
      %p164 = scmp.ne.s32.totalorder %s153, %s156
      %p165 = scmp.eq.s32.totalorder %s19, 8
      %p166 = por %p164, %p165
      %p167 = scmp.ne.s32.totalorder %s156, %s157
      %p168 = scmp.eq.s32.totalorder %s19, 0
      %p169 = por %p167, %p168
      %p170 = scmp.ne.s32.totalorder %s156, %s157
      %p171 = scmp.eq.s32.totalorder %s20, 8
      %p172 = por %p170, %p171
      %p174 = scmp.ne.s32.totalorder %s157, %s173
      %p175 = scmp.eq.s32.totalorder %s20, 0
      %p176 = por %p174, %p175
      %p177 = scmp.le.s32.totalorder 1, %s14
      %p178 = scmp.lt.s32.totalorder %s14, 10
      %p179 = pnand %p177, %p178
      %p180 = pneg %p179
      // Predicated region
      $region9: #{tpu_custom_call.1} parent=5 // pred_check
        _
      $region10: #{tpu_custom_call.1} parent=5 // pred_check_branch
        %182 = sbr.rel (%p179) target = $region12
      $region11: #{tpu_custom_call.1} parent=5 // pred_region
        %s183 = ssub.s32 %s14, 1
        // Predicated region
        $region13: #{tpu_custom_call.1} parent=11 // pred_check
          %p184 = pneg %p101
        $region14: #{tpu_custom_call.1} parent=11 // pred_check_branch
          %186 = sbr.rel (%p184) target = $region16
        $region15: #{tpu_custom_call.1} parent=11 // pred_region
          _
        $region16: #{tpu_custom_call.1} parent=11 // pred_fallthru
          _
        // Predicated region
        $region17: #{tpu_custom_call.1} parent=11 // pred_check
          %p187 = pneg %p122
        $region18: #{tpu_custom_call.1} parent=11 // pred_check_branch
          %189 = sbr.rel (%p187) target = $region20
        $region19: #{tpu_custom_call.1} parent=11 // pred_region
          _
        $region20: #{tpu_custom_call.1} parent=11 // pred_fallthru
          _
        // Predicated region
        $region21: #{tpu_custom_call.1} parent=11 // pred_check
          %p190 = pneg %p143
        $region22: #{tpu_custom_call.1} parent=11 // pred_check_branch
          %192 = sbr.rel (%p190) target = $region24
        $region23: #{tpu_custom_call.1} parent=11 // pred_region
          _
        $region24: #{tpu_custom_call.1} parent=11 // pred_fallthru
          _
      $region12: #{tpu_custom_call.1} parent=5 // pred_fallthru
        _
      %p193 = scmp.lt.s32.totalorder %s14, 9
      // Predicated region
      $region25: #{tpu_custom_call.1} parent=5 // pred_check
        %p194 = pneg %p193
      $region26: #{tpu_custom_call.1} parent=5 // pred_check_branch
        %196 = sbr.rel (%p194) target = $region28
      $region27: #{tpu_custom_call.1} parent=5 // pred_region
        // Predicated region
        $region29: #{tpu_custom_call.1} parent=27 // pred_check
          %p197 = pneg %p48
        $region30: #{tpu_custom_call.1} parent=27 // pred_check_branch
          %199 = sbr.rel (%p197) target = $region32
        $region31: #{tpu_custom_call.1} parent=27 // pred_region
          %s200 = sand.u32 %s38, 1
          %s201 = scalar_lea.sflag [#allocation4], %s200
          %s202 = sand.u32 %s38, 1
          %s203 = smul.addr %s202, 64
          %s204 = scalar_lea.vmem [#allocation3], %s203
          %s205 = smul.u32 16, %s21
          %s207 = ssub.s32 1024, 1024
          %208 = vsyncadd %s201, %s207
          %s209 = smul.addr %s205, 3
          %s210 = sadd.s32 %s22, %s209
          %s211 = smul.addr %s210, 64
          %s212 = scalar_lea.hbm %s0, %s211
          %s213 = sshll.u32 %s204, 4
          %s214 = int_to_ptr.vmem [resolvable:$true] %s213
          %219 = dma.hbm_to_vmem [thread:$0]  %s212, 1024, %s214, %s201, 192, 64, 4
        $region32: #{tpu_custom_call.1} parent=27 // pred_fallthru
          _
        // Predicated region
        $region33: #{tpu_custom_call.1} parent=27 // pred_check
          %p220 = pneg %p74
        $region34: #{tpu_custom_call.1} parent=27 // pred_check_branch
          %222 = sbr.rel (%p220) target = $region36
        $region35: #{tpu_custom_call.1} parent=27 // pred_region
          %s223 = smul.u32 16, %s22
          %p224 = scmp.lt.s32.totalorder %s223, 47
          %s225 = scalar_select %p224, %s223, 47
          %s226 = smul.addr %s225, 4
          %s227 = scalar_lea.vmem %s1, %s226
          %s228 = smul.u32 16, %s22
        $region36: #{tpu_custom_call.1} parent=27 // pred_fallthru
          _
      $region28: #{tpu_custom_call.1} parent=5 // pred_fallthru
        _
      %p229 = scmp.le.s32.totalorder 1, %s14
      %p230 = scmp.lt.s32.totalorder %s14, 10
      %p231 = pnand %p229, %p230
      %p232 = pneg %p231
      // Predicated region
      $region37: #{tpu_custom_call.1} parent=5 // pred_check
        _
      $region38: #{tpu_custom_call.1} parent=5 // pred_check_branch
        %234 = sbr.rel (%p231) target = $region40
      $region39: #{tpu_custom_call.1} parent=5 // pred_region
        %s235 = ssub.s32 %s14, 1
        %s236 = sand.u32 %s41, 1
        %s237 = scalar_lea.sflag [#allocation4], %s236
        %s238 = sand.u32 %s41, 1
        %s239 = smul.addr %s238, 64
        %s240 = scalar_lea.vmem [#allocation3], %s239
        // Predicated region
        $region41: #{tpu_custom_call.1} parent=39 // pred_check
          %p241 = pneg %p54
        $region42: #{tpu_custom_call.1} parent=39 // pred_check_branch
          %243 = sbr.rel (%p241) target = $region44
        $region43: #{tpu_custom_call.1} parent=39 // pred_region
          %244 = dma.done %s237, 1024
        $region44: #{tpu_custom_call.1} parent=39 // pred_fallthru
          _
        %s245 = sand.u32 %s41, 1
        %s246 = scalar_lea.sflag [#allocation4], %s245
        %s247 = sand.u32 %s41, 1
        %s248 = smul.addr %s247, 64
        %s249 = scalar_lea.vmem [#allocation3], %s248
        %p250 = pneg %p54
        %p251 = pneg %p51
        %s252 = smul.u32 16, %s24
        %p253 = scmp.lt.s32.totalorder %s252, 47
        %s254 = scalar_select %p253, %s252, 47
        %s255 = smul.addr %s254, 4
        %s256 = scalar_lea.vmem %s1, %s255
        %p257 = pneg %p80
        %p258 = pneg %p77
        %p259 = pneg %p101
        %p260 = pneg %p98
        %p261 = pneg %p122
        %p262 = pneg %p119
        %p263 = pneg %p143
        %p264 = pneg %p140
        %p265 = pneg %p169
        %p266 = pneg %p166
        %s267 = smul.u32 16, %s23
        %p268 = scmp.lt.s32.totalorder %s267, 47
        %s269 = scalar_select %p268, %s267, 47
        %s270 = smul.addr %s269, 4
        %s271 = scalar_lea.vmem %s5, %s270
        %s272 = smul.u32 16, %s23
        %s273 = smul.u32 16, %s24
        %p274 = scmp.lt.s32.totalorder %s273, 47
        %s275 = scalar_select %p274, %s273, 47
        %s276 = smul.addr %s275, 4
        %s277 = scalar_lea.vmem %s1, %s276
        %s278 = smul.u32 16, %s24
        %s279 = smul.u32 16, %s23
        %p280 = scmp.lt.s32.totalorder %s279, 47
        %s281 = scalar_select %p280, %s279, 47
        %s282 = smul.addr %s281, 4
        %s283 = scalar_lea.vmem %s5, %s282
        %s284 = smul.u32 16, %s23
        %p286 = scmp.eq.s32.totalorder %s24, 0
        // Predicated region
        $region45: #{tpu_custom_call.1} parent=39 // pred_check
          %p287 = pneg %p286
        $region46: #{tpu_custom_call.1} parent=39 // pred_check_branch
          %289 = sbr.rel (%p287) target = $region48
        $region47: #{tpu_custom_call.1} parent=39 // pred_region
          %vm290 = vcmask 261120
          %291 = vst.msk [vmem:[#allocation2] sm:$0xff] %vm290, 0.0
          %292 = vst.msk [vmem:[#allocation2 + $0x8] sm:$0xff] %vm290, 0.0
          %293 = vst.msk [vmem:[#allocation2 + $0x10] sm:$0xff] %vm290, 0.0
          %294 = vst.msk [vmem:[#allocation2 + $0x18] sm:$0xff] %vm290, 0.0
          %295 = vst.msk [vmem:[#allocation2 + $0x20] sm:$0xff] %vm290, 0.0
          %296 = vst.msk [vmem:[#allocation2 + $0x28] sm:$0xff] %vm290, 0.0
          %297 = vst.msk [vmem:[#allocation2 + $0x30] sm:$0xff] %vm290, 0.0
          %298 = vst.msk [vmem:[#allocation2 + $0x38] sm:$0xff] %vm290, 0.0
          %299 = vst.msk [vmem:[#allocation2 + $0x40] sm:$0xff] %vm290, 0.0
          %300 = vst.msk [vmem:[#allocation2 + $0x48] sm:$0xff] %vm290, 0.0
          %301 = vst.msk [vmem:[#allocation2 + $0x50] sm:$0xff] %vm290, 0.0
          %302 = vst.msk [vmem:[#allocation2 + $0x58] sm:$0xff] %vm290, 0.0
          %303 = vst.msk [vmem:[#allocation2 + $0x60] sm:$0xff] %vm290, 0.0
          %304 = vst.msk [vmem:[#allocation2 + $0x68] sm:$0xff] %vm290, 0.0
          %305 = vst.msk [vmem:[#allocation2 + $0x70] sm:$0xff] %vm290, 0.0
          %306 = vst.msk [vmem:[#allocation2 + $0x78] sm:$0xff] %vm290, 0.0
        $region48: #{tpu_custom_call.1} parent=39 // pred_fallthru
          _
        %v307 = vld [vmem:[#allocation2] sm:$0xff]
        %v308 = vld [vmem:[#allocation2 + $0x8] sm:$0xff]
        %v309 = vld [vmem:[#allocation2 + $0x10] sm:$0xff]
        %v310 = vld [vmem:[#allocation2 + $0x18] sm:$0xff]
        %v311 = vld [vmem:[#allocation2 + $0x20] sm:$0xff]
        %v312 = vld [vmem:[#allocation2 + $0x28] sm:$0xff]
        %v313 = vld [vmem:[#allocation2 + $0x30] sm:$0xff]
        %v314 = vld [vmem:[#allocation2 + $0x38] sm:$0xff]
        %v315 = vld [vmem:[#allocation2 + $0x40] sm:$0xff]
        %v316 = vld [vmem:[#allocation2 + $0x48] sm:$0xff]
        %v317 = vld [vmem:[#allocation2 + $0x50] sm:$0xff]
        %v318 = vld [vmem:[#allocation2 + $0x58] sm:$0xff]
        %v319 = vld [vmem:[#allocation2 + $0x60] sm:$0xff]
        %v320 = vld [vmem:[#allocation2 + $0x68] sm:$0xff]
        %v321 = vld [vmem:[#allocation2 + $0x70] sm:$0xff]
        %v322 = vld [vmem:[#allocation2 + $0x78] sm:$0xff]
        %v323 = vld [vmem:[%s240] sm:$0xf]
        %v324 = vld [vmem:[%s240 + $0x4] sm:$0xf]
        %v325 = vld [vmem:[%s240 + $0x8] sm:$0xf]
        %v326 = vld [vmem:[%s240 + $0xc] sm:$0xf]
        %v327 = vld [vmem:[%s240 + $0x10] sm:$0xf]
        %v328 = vld [vmem:[%s240 + $0x14] sm:$0xf]
        %v329 = vld [vmem:[%s240 + $0x18] sm:$0xf]
        %v330 = vld [vmem:[%s240 + $0x1c] sm:$0xf]
        %v331 = vld [vmem:[%s240 + $0x20] sm:$0xf]
        %v332 = vld [vmem:[%s240 + $0x24] sm:$0xf]
        %v333 = vld [vmem:[%s240 + $0x28] sm:$0xf]
        %v334 = vld [vmem:[%s240 + $0x2c] sm:$0xf]
        %v335 = vld [vmem:[%s240 + $0x30] sm:$0xf]
        %v336 = vld [vmem:[%s240 + $0x34] sm:$0xf]
        %v337 = vld [vmem:[%s240 + $0x38] sm:$0xf]
        %v338 = vld [vmem:[%s240 + $0x3c] sm:$0xf]
        %v339 = vld [vmem:[%s277] sm:$0xf]
        %v340 = vld [vmem:[%s277 + $0x4] sm:$0xf]
        %v341 = vld [vmem:[%s277 + $0x8] sm:$0xf]
        %v342 = vld [vmem:[%s277 + $0xc] sm:$0xf]
        %v343 = vld [vmem:[%s277 + $0x10] sm:$0xf]
        %v344 = vld [vmem:[%s277 + $0x14] sm:$0xf]
        %v345 = vld [vmem:[%s277 + $0x18] sm:$0xf]
        %v346 = vld [vmem:[%s277 + $0x1c] sm:$0xf]
        %v347 = vld [vmem:[%s277 + $0x20] sm:$0xf]
        %v348 = vld [vmem:[%s277 + $0x24] sm:$0xf]
        %v349 = vld [vmem:[%s277 + $0x28] sm:$0xf]
        %v350 = vld [vmem:[%s277 + $0x2c] sm:$0xf]
        %v351 = vld [vmem:[%s277 + $0x30] sm:$0xf]
        %v352 = vld [vmem:[%s277 + $0x34] sm:$0xf]
        %v353 = vld [vmem:[%s277 + $0x38] sm:$0xf]
        %v354 = vld [vmem:[%s277 + $0x3c] sm:$0xf]
        %v371 = vunpack.c.l.b16 %v323
        %v372 = vunpack.c.l.b16 %v324
        %v373 = vunpack.c.l.b16 %v325
        %v374 = vunpack.c.l.b16 %v326
        %v375 = vunpack.c.l.b16 %v327
        %v376 = vunpack.c.l.b16 %v328
        %v377 = vunpack.c.l.b16 %v329
        %v378 = vunpack.c.l.b16 %v330
        %v379 = vunpack.c.l.b16 %v331
        %v380 = vunpack.c.l.b16 %v332
        %v381 = vunpack.c.l.b16 %v333
        %v382 = vunpack.c.l.b16 %v334
        %v383 = vunpack.c.l.b16 %v335
        %v384 = vunpack.c.l.b16 %v336
        %v385 = vunpack.c.l.b16 %v337
        %v386 = vunpack.c.l.b16 %v338
        %v387 = vpack.c.b16 %v372, %v371
        %v388 = vpack.c.b16 %v374, %v373
        %v389 = vpack.c.b16 %v376, %v375
        %v390 = vpack.c.b16 %v378, %v377
        %v391 = vpack.c.b16 %v380, %v379
        %v392 = vpack.c.b16 %v382, %v381
        %v393 = vpack.c.b16 %v384, %v383
        %v394 = vpack.c.b16 %v386, %v385
        %v419 = vunpack.c.l.b16 %v339
        %v420 = vunpack.c.l.b16 %v340
        %v421 = vunpack.c.l.b16 %v341
        %v422 = vunpack.c.l.b16 %v342
        %v423 = vunpack.c.l.b16 %v343
        %v424 = vunpack.c.l.b16 %v344
        %v425 = vunpack.c.l.b16 %v345
        %v426 = vunpack.c.l.b16 %v346
        %v427 = vunpack.c.l.b16 %v347
        %v428 = vunpack.c.l.b16 %v348
        %v429 = vunpack.c.l.b16 %v349
        %v430 = vunpack.c.l.b16 %v350
        %v431 = vunpack.c.l.b16 %v351
        %v432 = vunpack.c.l.b16 %v352
        %v433 = vunpack.c.l.b16 %v353
        %v434 = vunpack.c.l.b16 %v354
        %v435 = vpack.c.b16 %v420, %v419
        %v436 = vpack.c.b16 %v422, %v421
        %v437 = vpack.c.b16 %v424, %v423
        %v438 = vpack.c.b16 %v426, %v425
        %v439 = vpack.c.b16 %v428, %v427
        %v440 = vpack.c.b16 %v430, %v429
        %v441 = vpack.c.b16 %v432, %v431
        %v442 = vpack.c.b16 %v434, %v433
        %451 = vmatprep.subr.bf16.mxu0 0
        %452 = vmatpush1.bf16.msra.mxu0 %v435
        %453 = vmatprep.subr.bf16.mxu0 0
        %454 = vmatpush1.bf16.msra.mxu0 %v436
        %455 = vmatprep.subr.bf16.mxu0 0
        %456 = vmatpush1.bf16.msra.mxu0 %v437
        %457 = vmatprep.subr.bf16.mxu0 0
        %458 = vmatpush1.bf16.msra.mxu0 %v438
        %459 = vmatprep.subr.bf16.mxu0 0
        %460 = vmatpush1.bf16.msra.mxu0 %v439
        %461 = vmatprep.subr.bf16.mxu0 0
        %462 = vmatpush1.bf16.msra.mxu0 %v440
        %463 = vmatprep.subr.bf16.mxu0 0
        %464 = vmatpush1.bf16.msra.mxu0 %v441
        %465 = vmatprep.subr.bf16.mxu0 0
        %466 = vmatpush1.bf16.msra.mxu0 %v442
        %467 = vmatprep.subr.bf16.mxu0 0
        %468 = vmatpush1.bf16.msra.mxu0 0
        %469 = vmatprep.subr.bf16.mxu0 0
        %470 = vmatpush1.bf16.msra.mxu0 0
        %471 = vmatprep.subr.bf16.mxu0 0
        %472 = vmatpush1.bf16.msra.mxu0 0
        %473 = vmatprep.subr.bf16.mxu0 0
        %474 = vmatpush1.bf16.msra.mxu0 0
        %475 = vmatprep.subr.bf16.mxu0 0
        %476 = vmatpush1.bf16.msra.mxu0 0
        %477 = vmatprep.subr.bf16.mxu0 0
        %478 = vmatpush1.bf16.msra.mxu0 0
        %479 = vmatprep.subr.bf16.mxu0 0
        %480 = vmatpush1.bf16.msra.mxu0 0
        %481 = vmatprep.subr.bf16.mxu0 0
        %482 = vmatpush1.bf16.msra.mxu0 0
        %483 = vmatprep.mubr.bf16.mxu0 0
        %484 = vmatmul.mubr.bf16.gmra.mrb[0].mxu0 %v387
        %v485 = vpop.f32.mrb[0].mxu0
        %v486 = vadd.f32 0.0, %v485
        %v487 = vpop.f32.mrb[0].mxu0
        %v488 = vpop.f32.mrb[0].mxu0
        %v489 = vadd.f32 0.0, %v488
        %v490 = vpop.f32.mrb[0].mxu0
        %491 = vmatprep.mubr.bf16.mxu0 0
        %492 = vmatmul.mubr.bf16.gmra.mrb[0].mxu0 %v388
        %v493 = vpop.f32.mrb[0].mxu0
        %v494 = vadd.f32 0.0, %v493
        %v495 = vpop.f32.mrb[0].mxu0
        %v496 = vpop.f32.mrb[0].mxu0
        %v497 = vadd.f32 0.0, %v496
        %v498 = vpop.f32.mrb[0].mxu0
        %499 = vmatprep.mubr.bf16.mxu0 0
        %500 = vmatmul.mubr.bf16.gmra.mrb[0].mxu0 %v389
        %v501 = vpop.f32.mrb[0].mxu0
        %v502 = vadd.f32 0.0, %v501
        %v503 = vpop.f32.mrb[0].mxu0
        %v504 = vpop.f32.mrb[0].mxu0
        %v505 = vadd.f32 0.0, %v504
        %v506 = vpop.f32.mrb[0].mxu0
        %507 = vmatprep.mubr.bf16.mxu0 0
        %508 = vmatmul.mubr.bf16.gmra.mrb[0].mxu0 %v390
        %v509 = vpop.f32.mrb[0].mxu0
        %v510 = vadd.f32 0.0, %v509
        %v511 = vpop.f32.mrb[0].mxu0
        %v512 = vpop.f32.mrb[0].mxu0
        %v513 = vadd.f32 0.0, %v512
        %v514 = vpop.f32.mrb[0].mxu0
        %515 = vmatprep.mubr.bf16.mxu0 0
        %516 = vmatmul.mubr.bf16.gmra.mrb[0].mxu0 %v391
        %v517 = vpop.f32.mrb[0].mxu0
        %v518 = vadd.f32 0.0, %v517
        %v519 = vpop.f32.mrb[0].mxu0
        %v520 = vpop.f32.mrb[0].mxu0
        %v521 = vadd.f32 0.0, %v520
        %v522 = vpop.f32.mrb[0].mxu0
        %523 = vmatprep.mubr.bf16.mxu0 0
        %524 = vmatmul.mubr.bf16.gmra.mrb[0].mxu0 %v392
        %v525 = vpop.f32.mrb[0].mxu0
        %v526 = vadd.f32 0.0, %v525
        %v527 = vpop.f32.mrb[0].mxu0
        %v528 = vpop.f32.mrb[0].mxu0
        %v529 = vadd.f32 0.0, %v528
        %v530 = vpop.f32.mrb[0].mxu0
        %531 = vmatprep.mubr.bf16.mxu0 0
        %532 = vmatmul.mubr.bf16.gmra.mrb[0].mxu0 %v393
        %v533 = vpop.f32.mrb[0].mxu0
        %v534 = vadd.f32 0.0, %v533
        %v535 = vpop.f32.mrb[0].mxu0
        %v536 = vpop.f32.mrb[0].mxu0
        %v537 = vadd.f32 0.0, %v536
        %v538 = vpop.f32.mrb[0].mxu0
        %539 = vmatprep.mubr.bf16.mxu0 0
        %540 = vmatmul.mubr.bf16.gmra.mrb[0].mxu0 %v394
        %v541 = vpop.f32.mrb[0].mxu0
        %v542 = vadd.f32 0.0, %v541
        %v543 = vpop.f32.mrb[0].mxu0
        %v544 = vpop.f32.mrb[0].mxu0
        %v545 = vadd.f32 0.0, %v544
        %v546 = vpop.f32.mrb[0].mxu0
        %547 = vdwg.mxu0
        %v548 = vadd.f32 %v307, %v486
        %v549 = vadd.f32 %v308, %v489
        %v550 = vadd.f32 %v309, %v494
        %v551 = vadd.f32 %v310, %v497
        %v552 = vadd.f32 %v311, %v502
        %v553 = vadd.f32 %v312, %v505
        %v554 = vadd.f32 %v313, %v510
        %v555 = vadd.f32 %v314, %v513
        %v556 = vadd.f32 %v315, %v518
        %v557 = vadd.f32 %v316, %v521
        %v558 = vadd.f32 %v317, %v526
        %v559 = vadd.f32 %v318, %v529
        %v560 = vadd.f32 %v319, %v534
        %v561 = vadd.f32 %v320, %v537
        %v562 = vadd.f32 %v321, %v542
        %v563 = vadd.f32 %v322, %v545
        %vm564 = vcmask 261120
        %565 = vst.msk [vmem:[#allocation2] sm:$0xff] %vm564, %v548
        %566 = vst.msk [vmem:[#allocation2 + $0x8] sm:$0xff] %vm564, %v549
        %567 = vst.msk [vmem:[#allocation2 + $0x10] sm:$0xff] %vm564, %v550
        %568 = vst.msk [vmem:[#allocation2 + $0x18] sm:$0xff] %vm564, %v551
        %569 = vst.msk [vmem:[#allocation2 + $0x20] sm:$0xff] %vm564, %v552
        %570 = vst.msk [vmem:[#allocation2 + $0x28] sm:$0xff] %vm564, %v553
        %571 = vst.msk [vmem:[#allocation2 + $0x30] sm:$0xff] %vm564, %v554
        %572 = vst.msk [vmem:[#allocation2 + $0x38] sm:$0xff] %vm564, %v555
        %573 = vst.msk [vmem:[#allocation2 + $0x40] sm:$0xff] %vm564, %v556
        %574 = vst.msk [vmem:[#allocation2 + $0x48] sm:$0xff] %vm564, %v557
        %575 = vst.msk [vmem:[#allocation2 + $0x50] sm:$0xff] %vm564, %v558
        %576 = vst.msk [vmem:[#allocation2 + $0x58] sm:$0xff] %vm564, %v559
        %577 = vst.msk [vmem:[#allocation2 + $0x60] sm:$0xff] %vm564, %v560
        %578 = vst.msk [vmem:[#allocation2 + $0x68] sm:$0xff] %vm564, %v561
        %579 = vst.msk [vmem:[#allocation2 + $0x70] sm:$0xff] %vm564, %v562
        %580 = vst.msk [vmem:[#allocation2 + $0x78] sm:$0xff] %vm564, %v563
        %p581 = scmp.eq.s32.totalorder %s24, 2
        // Predicated region
        $region49: #{tpu_custom_call.1} parent=39 // pred_check
          %p582 = pneg %p581
        $region50: #{tpu_custom_call.1} parent=39 // pred_check_branch
          %584 = sbr.rel (%p582) target = $region52
        $region51: #{tpu_custom_call.1} parent=39 // pred_region
          %v585 = vld [vmem:[#allocation2] sm:$0xff]
          %v586 = vld [vmem:[#allocation2 + $0x8] sm:$0xff]
          %v587 = vld [vmem:[#allocation2 + $0x10] sm:$0xff]
          %v588 = vld [vmem:[#allocation2 + $0x18] sm:$0xff]
          %v589 = vld [vmem:[#allocation2 + $0x20] sm:$0xff]
          %v590 = vld [vmem:[#allocation2 + $0x28] sm:$0xff]
          %v591 = vld [vmem:[#allocation2 + $0x30] sm:$0xff]
          %v592 = vld [vmem:[#allocation2 + $0x38] sm:$0xff]
          %v593 = vld [vmem:[#allocation2 + $0x40] sm:$0xff]
          %v594 = vld [vmem:[#allocation2 + $0x48] sm:$0xff]
          %v595 = vld [vmem:[#allocation2 + $0x50] sm:$0xff]
          %v596 = vld [vmem:[#allocation2 + $0x58] sm:$0xff]
          %v597 = vld [vmem:[#allocation2 + $0x60] sm:$0xff]
          %v598 = vld [vmem:[#allocation2 + $0x68] sm:$0xff]
          %v599 = vld [vmem:[#allocation2 + $0x70] sm:$0xff]
          %v600 = vld [vmem:[#allocation2 + $0x78] sm:$0xff]
          %v601 = vld [vmem:[%s2] sm:$0xff]
          %v602 = vld [vmem:[%s2 + $0x8] sm:$0xff]
          %v603 = vld [vmem:[%s2 + $0x10] sm:$0xff]
          %v604 = vld [vmem:[%s2 + $0x18] sm:$0xff]
          %v606 = vsel %vm564, %v585, 0
          %v609 = vsel %vm564, %v586, 0
          %v612 = vsel %vm564, %v587, 0
          %v615 = vsel %vm564, %v588, 0
          %v618 = vsel %vm564, %v589, 0
          %v621 = vsel %vm564, %v590, 0
          %v624 = vsel %vm564, %v591, 0
          %v627 = vsel %vm564, %v592, 0
          %v630 = vsel %vm564, %v593, 0
          %v633 = vsel %vm564, %v594, 0
          %v636 = vsel %vm564, %v595, 0
          %v639 = vsel %vm564, %v596, 0
          %v642 = vsel %vm564, %v597, 0
          %v645 = vsel %vm564, %v598, 0
          %v648 = vsel %vm564, %v599, 0
          %v651 = vsel %vm564, %v600, 0
          %653 = vmatprep.subr.mxu0 0.0
          %654 = vmatpush1.msra.mxu0 %v601
          %655 = vmatprep.subr.mxu0 0.0
          %656 = vmatpush1.msra.mxu0 %v602
          %657 = vmatprep.subr.mxu0 0.0
          %658 = vmatpush1.msra.mxu0 %v603
          %659 = vmatprep.subr.mxu0 0.0
          %660 = vmatpush1.msra.mxu0 %v604
          %661 = vmatprep.subr.mxu0 0.0
          %662 = vmatpush1.msra.mxu0 0.0
          %663 = vmatprep.subr.mxu0 0.0
          %664 = vmatpush1.msra.mxu0 0.0
          %665 = vmatprep.subr.mxu0 0.0
          %666 = vmatpush1.msra.mxu0 0.0
          %667 = vmatprep.subr.mxu0 0.0
          %668 = vmatpush1.msra.mxu0 0.0
          %669 = vmatprep.subr.mxu0 0.0
          %670 = vmatpush1.msra.mxu0 0.0
          %671 = vmatprep.subr.mxu0 0.0
          %672 = vmatpush1.msra.mxu0 0.0
          %673 = vmatprep.subr.mxu0 0.0
          %674 = vmatpush1.msra.mxu0 0.0
          %675 = vmatprep.subr.mxu0 0.0
          %676 = vmatpush1.msra.mxu0 0.0
          %677 = vmatprep.subr.mxu0 0.0
          %678 = vmatpush1.msra.mxu0 0.0
          %679 = vmatprep.subr.mxu0 0.0
          %680 = vmatpush1.msra.mxu0 0.0
          %681 = vmatprep.subr.mxu0 0.0
          %682 = vmatpush1.msra.mxu0 0.0
          %683 = vmatprep.subr.mxu0 0.0
          %684 = vmatpush1.msra.mxu0 0.0
          %685 = vmatprep.subr.mxu0 0.0
          %686 = vmatpush1.msra.mxu0 0.0
          %687 = vmatprep.subr.mxu0 0.0
          %688 = vmatpush1.msra.mxu0 0.0
          %689 = vmatprep.subr.mxu0 0.0
          %690 = vmatpush1.msra.mxu0 0.0
          %691 = vmatprep.subr.mxu0 0.0
          %692 = vmatpush1.msra.mxu0 0.0
          %693 = vmatprep.subr.mxu0 0.0
          %694 = vmatpush1.msra.mxu0 0.0
          %695 = vmatprep.subr.mxu0 0.0
          %696 = vmatpush1.msra.mxu0 0.0
          %697 = vmatprep.subr.mxu0 0.0
          %698 = vmatpush1.msra.mxu0 0.0
          %699 = vmatprep.subr.mxu0 0.0
          %700 = vmatpush1.msra.mxu0 0.0
          %701 = vmatprep.subr.mxu0 0.0
          %702 = vmatpush1.msra.mxu0 0.0
          %703 = vmatprep.subr.mxu0 0.0
          %704 = vmatpush1.msra.mxu0 0.0
          %705 = vmatprep.subr.mxu0 0.0
          %706 = vmatpush1.msra.mxu0 0.0
          %707 = vmatprep.subr.mxu0 0.0
          %708 = vmatpush1.msra.mxu0 0.0
          %709 = vmatprep.subr.mxu0 0.0
          %710 = vmatpush1.msra.mxu0 0.0
          %711 = vmatprep.subr.mxu0 0.0
          %712 = vmatpush1.msra.mxu0 0.0
          %713 = vmatprep.subr.mxu0 0.0
          %714 = vmatpush1.msra.mxu0 0.0
          %715 = vmatprep.subr.mxu0 0.0
          %716 = vmatpush1.msra.mxu0 0.0
          %717 = vmatprep.mubr.f32.mxu0 0.0
          %718 = vmatmul.mubr.f32.gmra.mrb[0].mxu0 %v606
          %v719 = vpop.f32.mrb[0].mxu0
          %v720 = vadd.f32 0.0, %v719
          %v721 = vpop.f32.mrb[0].mxu0
          %722 = vmatprep.mubr.f32.mxu0 0.0
          %723 = vmatmul.mubr.f32.gmra.mrb[0].mxu0 %v609
          %v724 = vpop.f32.mrb[0].mxu0
          %v725 = vadd.f32 0.0, %v724
          %v726 = vpop.f32.mrb[0].mxu0
          %727 = vmatprep.mubr.f32.mxu0 0.0
          %728 = vmatmul.mubr.f32.gmra.mrb[0].mxu0 %v612
          %v729 = vpop.f32.mrb[0].mxu0
          %v730 = vadd.f32 0.0, %v729
          %v731 = vpop.f32.mrb[0].mxu0
          %732 = vmatprep.mubr.f32.mxu0 0.0
          %733 = vmatmul.mubr.f32.gmra.mrb[0].mxu0 %v615
          %v734 = vpop.f32.mrb[0].mxu0
          %v735 = vadd.f32 0.0, %v734
          %v736 = vpop.f32.mrb[0].mxu0
          %737 = vmatprep.mubr.f32.mxu0 0.0
          %738 = vmatmul.mubr.f32.gmra.mrb[0].mxu0 %v618
          %v739 = vpop.f32.mrb[0].mxu0
          %v740 = vadd.f32 0.0, %v739
          %v741 = vpop.f32.mrb[0].mxu0
          %742 = vmatprep.mubr.f32.mxu0 0.0
          %743 = vmatmul.mubr.f32.gmra.mrb[0].mxu0 %v621
          %v744 = vpop.f32.mrb[0].mxu0
          %v745 = vadd.f32 0.0, %v744
          %v746 = vpop.f32.mrb[0].mxu0
          %747 = vmatprep.mubr.f32.mxu0 0.0
          %748 = vmatmul.mubr.f32.gmra.mrb[0].mxu0 %v624
          %v749 = vpop.f32.mrb[0].mxu0
          %v750 = vadd.f32 0.0, %v749
          %v751 = vpop.f32.mrb[0].mxu0
          %752 = vmatprep.mubr.f32.mxu0 0.0
          %753 = vmatmul.mubr.f32.gmra.mrb[0].mxu0 %v627
          %v754 = vpop.f32.mrb[0].mxu0
          %v755 = vadd.f32 0.0, %v754
          %v756 = vpop.f32.mrb[0].mxu0
          %757 = vmatprep.mubr.f32.mxu0 0.0
          %758 = vmatmul.mubr.f32.gmra.mrb[0].mxu0 %v630
          %v759 = vpop.f32.mrb[0].mxu0
          %v760 = vadd.f32 0.0, %v759
          %v761 = vpop.f32.mrb[0].mxu0
          %762 = vmatprep.mubr.f32.mxu0 0.0
          %763 = vmatmul.mubr.f32.gmra.mrb[0].mxu0 %v633
          %v764 = vpop.f32.mrb[0].mxu0
          %v765 = vadd.f32 0.0, %v764
          %v766 = vpop.f32.mrb[0].mxu0
          %767 = vmatprep.mubr.f32.mxu0 0.0
          %768 = vmatmul.mubr.f32.gmra.mrb[0].mxu0 %v636
          %v769 = vpop.f32.mrb[0].mxu0
          %v770 = vadd.f32 0.0, %v769
          %v771 = vpop.f32.mrb[0].mxu0
          %772 = vmatprep.mubr.f32.mxu0 0.0
          %773 = vmatmul.mubr.f32.gmra.mrb[0].mxu0 %v639
          %v774 = vpop.f32.mrb[0].mxu0
          %v775 = vadd.f32 0.0, %v774
          %v776 = vpop.f32.mrb[0].mxu0
          %777 = vmatprep.mubr.f32.mxu0 0.0
          %778 = vmatmul.mubr.f32.gmra.mrb[0].mxu0 %v642
          %v779 = vpop.f32.mrb[0].mxu0
          %v780 = vadd.f32 0.0, %v779
          %v781 = vpop.f32.mrb[0].mxu0
          %782 = vmatprep.mubr.f32.mxu0 0.0
          %783 = vmatmul.mubr.f32.gmra.mrb[0].mxu0 %v645
          %v784 = vpop.f32.mrb[0].mxu0
          %v785 = vadd.f32 0.0, %v784
          %v786 = vpop.f32.mrb[0].mxu0
          %787 = vmatprep.mubr.f32.mxu0 0.0
          %788 = vmatmul.mubr.f32.gmra.mrb[0].mxu0 %v648
          %v789 = vpop.f32.mrb[0].mxu0
          %v790 = vadd.f32 0.0, %v789
          %v791 = vpop.f32.mrb[0].mxu0
          %792 = vmatprep.mubr.f32.mxu0 0.0
          %793 = vmatmul.mubr.f32.gmra.mrb[0].mxu0 %v651
          %v794 = vpop.f32.mrb[0].mxu0
          %v795 = vadd.f32 0.0, %v794
          %v796 = vpop.f32.mrb[0].mxu0
          %797 = vdwg.mxu0
          %vm798 = vcmp.ge.f32.partialorder %v720, 0.0
          %vm799 = vcmp.ge.f32.partialorder %v725, 0.0
          %vm800 = vcmp.ge.f32.partialorder %v730, 0.0
          %vm801 = vcmp.ge.f32.partialorder %v735, 0.0
          %vm802 = vcmp.ge.f32.partialorder %v740, 0.0
          %vm803 = vcmp.ge.f32.partialorder %v745, 0.0
          %vm804 = vcmp.ge.f32.partialorder %v750, 0.0
          %vm805 = vcmp.ge.f32.partialorder %v755, 0.0
          %vm806 = vcmp.ge.f32.partialorder %v760, 0.0
          %vm807 = vcmp.ge.f32.partialorder %v765, 0.0
          %vm808 = vcmp.ge.f32.partialorder %v770, 0.0
          %vm809 = vcmp.ge.f32.partialorder %v775, 0.0
          %vm810 = vcmp.ge.f32.partialorder %v780, 0.0
          %vm811 = vcmp.ge.f32.partialorder %v785, 0.0
          %vm812 = vcmp.ge.f32.partialorder %v790, 0.0
          %vm813 = vcmp.ge.f32.partialorder %v795, 0.0
          %v814 = vld [vmem:[%s3] sm:$0x1]
          %v816 = vlaneseq
          %v817 = vshrl.u32 %v816, 7
          %v818 = vsub.s32 0, %v817
          %v819 = vrot.slane %v814, %v818
          %v821 = vmul.f32 %v819, %v720
          %v822 = vmul.f32 %v819, %v725
          %v823 = vmul.f32 %v819, %v730
          %v824 = vmul.f32 %v819, %v735
          %v825 = vmul.f32 %v819, %v740
          %v826 = vmul.f32 %v819, %v745
          %v827 = vmul.f32 %v819, %v750
          %v828 = vmul.f32 %v819, %v755
          %v829 = vmul.f32 %v819, %v760
          %v830 = vmul.f32 %v819, %v765
          %v831 = vmul.f32 %v819, %v770
          %v832 = vmul.f32 %v819, %v775
          %v833 = vmul.f32 %v819, %v780
          %v834 = vmul.f32 %v819, %v785
          %v835 = vmul.f32 %v819, %v790
          %v836 = vmul.f32 %v819, %v795
          %v837 = vsel %vm798, %v720, %v821
          %v838 = vsel %vm799, %v725, %v822
          %v839 = vsel %vm800, %v730, %v823
          %v840 = vsel %vm801, %v735, %v824
          %v841 = vsel %vm802, %v740, %v825
          %v842 = vsel %vm803, %v745, %v826
          %v843 = vsel %vm804, %v750, %v827
          %v844 = vsel %vm805, %v755, %v828
          %v845 = vsel %vm806, %v760, %v829
          %v846 = vsel %vm807, %v765, %v830
          %v847 = vsel %vm808, %v770, %v831
          %v848 = vsel %vm809, %v775, %v832
          %v849 = vsel %vm810, %v780, %v833
          %v850 = vsel %vm811, %v785, %v834
          %v851 = vsel %vm812, %v790, %v835
          %v852 = vsel %vm813, %v795, %v836
          %v853 = vld [vmem:[%s4] sm:$0xff]
          %v854 = vld [vmem:[%s4 + $0x8] sm:$0xff]
          %v855 = vld [vmem:[%s4 + $0x10] sm:$0xff]
          %v856 = vld [vmem:[%s4 + $0x18] sm:$0xff]
          %v857 = vld [vmem:[%s4 + $0x20] sm:$0xff]
          %v858 = vld [vmem:[%s4 + $0x28] sm:$0xff]
          %v859 = vld [vmem:[%s4 + $0x30] sm:$0xff]
          %v860 = vld [vmem:[%s4 + $0x38] sm:$0xff]
          %vm861 = vcmask 523264
          %v863 = vsel %vm861, %v837, 0
          %v866 = vsel %vm861, %v838, 0
          %v869 = vsel %vm861, %v839, 0
          %v872 = vsel %vm861, %v840, 0
          %v875 = vsel %vm861, %v841, 0
          %v878 = vsel %vm861, %v842, 0
          %v881 = vsel %vm861, %v843, 0
          %v884 = vsel %vm861, %v844, 0
          %v887 = vsel %vm861, %v845, 0
          %v890 = vsel %vm861, %v846, 0
          %v893 = vsel %vm861, %v847, 0
          %v896 = vsel %vm861, %v848, 0
          %v899 = vsel %vm861, %v849, 0
          %v902 = vsel %vm861, %v850, 0
          %v905 = vsel %vm861, %v851, 0
          %v908 = vsel %vm861, %v852, 0
          %910 = vmatprep.subr.mxu0 0.0
          %911 = vmatpush1.msra.mxu0 %v853
          %912 = vmatprep.subr.mxu0 0.0
          %913 = vmatpush1.msra.mxu0 %v854
          %914 = vmatprep.subr.mxu0 0.0
          %915 = vmatpush1.msra.mxu0 %v855
          %916 = vmatprep.subr.mxu0 0.0
          %917 = vmatpush1.msra.mxu0 %v856
          %918 = vmatprep.subr.mxu0 0.0
          %919 = vmatpush1.msra.mxu0 %v857
          %920 = vmatprep.subr.mxu0 0.0
          %921 = vmatpush1.msra.mxu0 %v858
          %922 = vmatprep.subr.mxu0 0.0
          %923 = vmatpush1.msra.mxu0 %v859
          %924 = vmatprep.subr.mxu0 0.0
          %925 = vmatpush1.msra.mxu0 %v860
          %926 = vmatprep.subr.mxu0 0.0
          %927 = vmatpush1.msra.mxu0 0.0
          %928 = vmatprep.subr.mxu0 0.0
          %929 = vmatpush1.msra.mxu0 0.0
          %930 = vmatprep.subr.mxu0 0.0
          %931 = vmatpush1.msra.mxu0 0.0
          %932 = vmatprep.subr.mxu0 0.0
          %933 = vmatpush1.msra.mxu0 0.0
          %934 = vmatprep.subr.mxu0 0.0
          %935 = vmatpush1.msra.mxu0 0.0
          %936 = vmatprep.subr.mxu0 0.0
          %937 = vmatpush1.msra.mxu0 0.0
          %938 = vmatprep.subr.mxu0 0.0
          %939 = vmatpush1.msra.mxu0 0.0
          %940 = vmatprep.subr.mxu0 0.0
          %941 = vmatpush1.msra.mxu0 0.0
          %942 = vmatprep.subr.mxu0 0.0
          %943 = vmatpush1.msra.mxu0 0.0
          %944 = vmatprep.subr.mxu0 0.0
          %945 = vmatpush1.msra.mxu0 0.0
          %946 = vmatprep.subr.mxu0 0.0
          %947 = vmatpush1.msra.mxu0 0.0
          %948 = vmatprep.subr.mxu0 0.0
          %949 = vmatpush1.msra.mxu0 0.0
          %950 = vmatprep.subr.mxu0 0.0
          %951 = vmatpush1.msra.mxu0 0.0
          %952 = vmatprep.subr.mxu0 0.0
          %953 = vmatpush1.msra.mxu0 0.0
          %954 = vmatprep.subr.mxu0 0.0
          %955 = vmatpush1.msra.mxu0 0.0
          %956 = vmatprep.subr.mxu0 0.0
          %957 = vmatpush1.msra.mxu0 0.0
          %958 = vmatprep.subr.mxu0 0.0
          %959 = vmatpush1.msra.mxu0 0.0
          %960 = vmatprep.subr.mxu0 0.0
          %961 = vmatpush1.msra.mxu0 0.0
          %962 = vmatprep.subr.mxu0 0.0
          %963 = vmatpush1.msra.mxu0 0.0
          %964 = vmatprep.subr.mxu0 0.0
          %965 = vmatpush1.msra.mxu0 0.0
          %966 = vmatprep.subr.mxu0 0.0
          %967 = vmatpush1.msra.mxu0 0.0
          %968 = vmatprep.subr.mxu0 0.0
          %969 = vmatpush1.msra.mxu0 0.0
          %970 = vmatprep.subr.mxu0 0.0
          %971 = vmatpush1.msra.mxu0 0.0
          %972 = vmatprep.subr.mxu0 0.0
          %973 = vmatpush1.msra.mxu0 0.0
          %974 = vmatprep.mubr.f32.mxu0 0.0
          %975 = vmatmul.mubr.f32.gmra.mrb[0].mxu0 %v863
          %v976 = vpop.f32.mrb[0].mxu0
          %v977 = vadd.f32 0.0, %v976
          %v978 = vpop.f32.mrb[0].mxu0
          %979 = vmatprep.mubr.f32.mxu0 0.0
          %980 = vmatmul.mubr.f32.gmra.mrb[0].mxu0 %v866
          %v981 = vpop.f32.mrb[0].mxu0
          %v982 = vadd.f32 0.0, %v981
          %v983 = vpop.f32.mrb[0].mxu0
          %984 = vmatprep.mubr.f32.mxu0 0.0
          %985 = vmatmul.mubr.f32.gmra.mrb[0].mxu0 %v869
          %v986 = vpop.f32.mrb[0].mxu0
          %v987 = vadd.f32 0.0, %v986
          %v988 = vpop.f32.mrb[0].mxu0
          %989 = vmatprep.mubr.f32.mxu0 0.0
          %990 = vmatmul.mubr.f32.gmra.mrb[0].mxu0 %v872
          %v991 = vpop.f32.mrb[0].mxu0
          %v992 = vadd.f32 0.0, %v991
          %v993 = vpop.f32.mrb[0].mxu0
          %994 = vmatprep.mubr.f32.mxu0 0.0
          %995 = vmatmul.mubr.f32.gmra.mrb[0].mxu0 %v875
          %v996 = vpop.f32.mrb[0].mxu0
          %v997 = vadd.f32 0.0, %v996
          %v998 = vpop.f32.mrb[0].mxu0
          %999 = vmatprep.mubr.f32.mxu0 0.0
          %1000 = vmatmul.mubr.f32.gmra.mrb[0].mxu0 %v878
          %v1001 = vpop.f32.mrb[0].mxu0
          %v1002 = vadd.f32 0.0, %v1001
          %v1003 = vpop.f32.mrb[0].mxu0
          %1004 = vmatprep.mubr.f32.mxu0 0.0
          %1005 = vmatmul.mubr.f32.gmra.mrb[0].mxu0 %v881
          %v1006 = vpop.f32.mrb[0].mxu0
          %v1007 = vadd.f32 0.0, %v1006
          %v1008 = vpop.f32.mrb[0].mxu0
          %1009 = vmatprep.mubr.f32.mxu0 0.0
          %1010 = vmatmul.mubr.f32.gmra.mrb[0].mxu0 %v884
          %v1011 = vpop.f32.mrb[0].mxu0
          %v1012 = vadd.f32 0.0, %v1011
          %v1013 = vpop.f32.mrb[0].mxu0
          %1014 = vmatprep.mubr.f32.mxu0 0.0
          %1015 = vmatmul.mubr.f32.gmra.mrb[0].mxu0 %v887
          %v1016 = vpop.f32.mrb[0].mxu0
          %v1017 = vadd.f32 0.0, %v1016
          %v1018 = vpop.f32.mrb[0].mxu0
          %1019 = vmatprep.mubr.f32.mxu0 0.0
          %1020 = vmatmul.mubr.f32.gmra.mrb[0].mxu0 %v890
          %v1021 = vpop.f32.mrb[0].mxu0
          %v1022 = vadd.f32 0.0, %v1021
          %v1023 = vpop.f32.mrb[0].mxu0
          %1024 = vmatprep.mubr.f32.mxu0 0.0
          %1025 = vmatmul.mubr.f32.gmra.mrb[0].mxu0 %v893
          %v1026 = vpop.f32.mrb[0].mxu0
          %v1027 = vadd.f32 0.0, %v1026
          %v1028 = vpop.f32.mrb[0].mxu0
          %1029 = vmatprep.mubr.f32.mxu0 0.0
          %1030 = vmatmul.mubr.f32.gmra.mrb[0].mxu0 %v896
          %v1031 = vpop.f32.mrb[0].mxu0
          %v1032 = vadd.f32 0.0, %v1031
          %v1033 = vpop.f32.mrb[0].mxu0
          %1034 = vmatprep.mubr.f32.mxu0 0.0
          %1035 = vmatmul.mubr.f32.gmra.mrb[0].mxu0 %v899
          %v1036 = vpop.f32.mrb[0].mxu0
          %v1037 = vadd.f32 0.0, %v1036
          %v1038 = vpop.f32.mrb[0].mxu0
          %1039 = vmatprep.mubr.f32.mxu0 0.0
          %1040 = vmatmul.mubr.f32.gmra.mrb[0].mxu0 %v902
          %v1041 = vpop.f32.mrb[0].mxu0
          %v1042 = vadd.f32 0.0, %v1041
          %v1043 = vpop.f32.mrb[0].mxu0
          %1044 = vmatprep.mubr.f32.mxu0 0.0
          %1045 = vmatmul.mubr.f32.gmra.mrb[0].mxu0 %v905
          %v1046 = vpop.f32.mrb[0].mxu0
          %v1047 = vadd.f32 0.0, %v1046
          %v1048 = vpop.f32.mrb[0].mxu0
          %1049 = vmatprep.mubr.f32.mxu0 0.0
          %1050 = vmatmul.mubr.f32.gmra.mrb[0].mxu0 %v908
          %v1051 = vpop.f32.mrb[0].mxu0
          %v1052 = vadd.f32 0.0, %v1051
          %v1053 = vpop.f32.mrb[0].mxu0
          %1054 = vdwg.mxu0
          %v1055 = vpack.c.bf16 %v982, %v977
          %v1056 = vpack.c.bf16 %v992, %v987
          %v1057 = vpack.c.bf16 %v1002, %v997
          %v1058 = vpack.c.bf16 %v1012, %v1007
          %v1059 = vpack.c.bf16 %v1022, %v1017
          %v1060 = vpack.c.bf16 %v1032, %v1027
          %v1061 = vpack.c.bf16 %v1042, %v1037
          %v1062 = vpack.c.bf16 %v1052, %v1047
          %v1071 = vunpack.c.l.b16 %v1055
          %v1072 = vunpack.c.h.b16 %v1055
          %v1073 = vunpack.c.l.b16 %v1056
          %v1074 = vunpack.c.h.b16 %v1056
          %v1075 = vunpack.c.l.b16 %v1057
          %v1076 = vunpack.c.h.b16 %v1057
          %v1077 = vunpack.c.l.b16 %v1058
          %v1078 = vunpack.c.h.b16 %v1058
          %v1079 = vunpack.c.l.b16 %v1059
          %v1080 = vunpack.c.h.b16 %v1059
          %v1081 = vunpack.c.l.b16 %v1060
          %v1082 = vunpack.c.h.b16 %v1060
          %v1083 = vunpack.c.l.b16 %v1061
          %v1084 = vunpack.c.h.b16 %v1061
          %v1085 = vunpack.c.l.b16 %v1062
          %v1086 = vunpack.c.h.b16 %v1062
          %v1087 = vpack.c.b16 %v1071, %v1071
          %v1088 = vpack.c.b16 %v1072, %v1072
          %v1089 = vpack.c.b16 %v1073, %v1073
          %v1090 = vpack.c.b16 %v1074, %v1074
          %v1091 = vpack.c.b16 %v1075, %v1075
          %v1092 = vpack.c.b16 %v1076, %v1076
          %v1093 = vpack.c.b16 %v1077, %v1077
          %v1094 = vpack.c.b16 %v1078, %v1078
          %v1095 = vpack.c.b16 %v1079, %v1079
          %v1096 = vpack.c.b16 %v1080, %v1080
          %v1097 = vpack.c.b16 %v1081, %v1081
          %v1098 = vpack.c.b16 %v1082, %v1082
          %v1099 = vpack.c.b16 %v1083, %v1083
          %v1100 = vpack.c.b16 %v1084, %v1084
          %v1101 = vpack.c.b16 %v1085, %v1085
          %v1102 = vpack.c.b16 %v1086, %v1086
          %vm1119 = vcmask 125952
          %1120 = vst.msk [vmem:[%s283] sm:$0xf] %vm1119, %v1087
          %1121 = vst.msk [vmem:[%s283 + $0x4] sm:$0xf] %vm1119, %v1088
          %1122 = vst.msk [vmem:[%s283 + $0x8] sm:$0xf] %vm1119, %v1089
          %1123 = vst.msk [vmem:[%s283 + $0xc] sm:$0xf] %vm1119, %v1090
          %1124 = vst.msk [vmem:[%s283 + $0x10] sm:$0xf] %vm1119, %v1091
          %1125 = vst.msk [vmem:[%s283 + $0x14] sm:$0xf] %vm1119, %v1092
          %1126 = vst.msk [vmem:[%s283 + $0x18] sm:$0xf] %vm1119, %v1093
          %1127 = vst.msk [vmem:[%s283 + $0x1c] sm:$0xf] %vm1119, %v1094
          %1128 = vst.msk [vmem:[%s283 + $0x20] sm:$0xf] %vm1119, %v1095
          %1129 = vst.msk [vmem:[%s283 + $0x24] sm:$0xf] %vm1119, %v1096
          %1130 = vst.msk [vmem:[%s283 + $0x28] sm:$0xf] %vm1119, %v1097
          %1131 = vst.msk [vmem:[%s283 + $0x2c] sm:$0xf] %vm1119, %v1098
          %1132 = vst.msk [vmem:[%s283 + $0x30] sm:$0xf] %vm1119, %v1099
          %1133 = vst.msk [vmem:[%s283 + $0x34] sm:$0xf] %vm1119, %v1100
          %1134 = vst.msk [vmem:[%s283 + $0x38] sm:$0xf] %vm1119, %v1101
          %1135 = vst.msk [vmem:[%s283 + $0x3c] sm:$0xf] %vm1119, %v1102
        $region52: #{tpu_custom_call.1} parent=39 // pred_fallthru
          _
        %s1136 = smul.u32 16, %s23
        %p1137 = scmp.lt.s32.totalorder %s1136, 47
        %s1138 = scalar_select %p1137, %s1136, 47
        %s1139 = smul.addr %s1138, 4
        %s1140 = scalar_lea.vmem %s5, %s1139
        // Predicated region
        $region53: #{tpu_custom_call.1} parent=39 // pred_check
          %p1141 = pneg %p166
        $region54: #{tpu_custom_call.1} parent=39 // pred_check_branch
          %1143 = sbr.rel (%p1141) target = $region56
        $region55: #{tpu_custom_call.1} parent=39 // pred_region
          %s1144 = smul.u32 16, %s23
        $region56: #{tpu_custom_call.1} parent=39 // pred_fallthru
          _
      $region40: #{tpu_custom_call.1} parent=5 // pred_fallthru
        _
      %p1145 = scmp.le.s32.totalorder 2, %s14
      // Predicated region
      $region57: #{tpu_custom_call.1} parent=5 // pred_check
        %p1146 = pneg %p1145
      $region58: #{tpu_custom_call.1} parent=5 // pred_check_branch
        %1148 = sbr.rel (%p1146) target = $region60
      $region59: #{tpu_custom_call.1} parent=5 // pred_region
        %s1149 = ssub.s32 %s14, 2
        // Predicated region
        $region61: #{tpu_custom_call.1} parent=59 // pred_check
          %p1150 = pneg %p172
        $region62: #{tpu_custom_call.1} parent=59 // pred_check_branch
          %1152 = sbr.rel (%p1150) target = $region64
        $region63: #{tpu_custom_call.1} parent=59 // pred_region
          %s1153 = smul.u32 16, %s25
          %p1154 = scmp.lt.s32.totalorder %s1153, 47
          %s1155 = scalar_select %p1154, %s1153, 47
          %s1156 = smul.addr %s1155, 4
          %s1157 = scalar_lea.vmem %s5, %s1156
        $region64: #{tpu_custom_call.1} parent=59 // pred_fallthru
          _
      $region60: #{tpu_custom_call.1} parent=5 // pred_fallthru
        _
    $region6: #{tpu_custom_call.1} parent=1 // loop_footer
      %s18 = sadd.s32 1, %s14
    $region7: #{tpu_custom_call.1} parent=1 // loop_footer_branch
      %13 = sbr.rel target = $region3
    $region8: #{tpu_custom_call.1} parent=1 // loop_exit
      _
    %1158 = vsyncpa [#allocation4], 1
    %s1159 = scalar_lea.sflag [#allocation4], 1
    %1160 = vsyncpa %s1159, 1

</llo_original>
